<compile_context>
chip_gen: v6e
topology: v6e:2x2x1
jax: 0.10.0
libtpu: 0.0.40
codegen_flags: <defaults>
</compile_context>

<pallas_src>
import functools

import jax
import jax.numpy as jnp
from jax import lax
from jax.experimental import pallas as pl
from jax.experimental.pallas import tpu as pltpu

LANES = 128                      # TPU lane width
ATTRS = ("conv1", "pool", "fc1", "fc2")


def _round_up(x, m):
    return ((x + m - 1) // m) * m


def _vmem_spec():
    # Whole-array block resident in VMEM (total footprint here is ~200 KB).
    return pl.BlockSpec(memory_space=pltpu.MemorySpace.VMEM)


# ------------------------------ fused kernel ------------------------------- #

def fused_feature_kernel(patches_ref, conv_w_ref, slab_ref,
                         conv1_ref, packed_ref,
                         *, B, OC, HW, SEC, bias_off, fc2w_off):
    """Whole FeatureExtractor forward in one kernel (intermediates stay in VMEM).

    patches_ref: [K_pad, B*HW] im2col patches, transposed (lanes = B*HW);
                 row 9*C is all-ones (folds the conv bias), rows above are 0.
    conv_w_ref:  [OC, K_pad]   conv weight ((c,kh,kw) flattened); col 9*C = bias.
    slab_ref:    [R, 128]      packed fc params (single input DMA):
                   rows 0:OC              fc1_w (cols 0:HID, rest 0)
                   row  bias_off          fc1_b (cols 0:HID)
                   row  bias_off+1        fc2_b (cols 0:NCLS)
                   rows fc2w_off:+128     fc2_w (rows 0:HID, cols 0:NCLS, rest 0)
    conv1_ref:   [B*OC, HW]    hook "conv1" output, NCHW-flattened (lane-dense).
    packed_ref:  [3*SEC, 128]  hooks "pool"/"fc1"/"fc2", lane-dense packed:
                   rows 0:B      pool (cols 0:OC)
                   rows SEC:+B   fc1  (cols 0:HID)
                   rows 2SEC:+B  fc2  (cols 0:NCLS)
    """
    # conv1 as a single im2col GEMM in transposed (lane-dense) orientation;
    # the bias is already folded in via the ones-row / bias-column trick.
    conv_t = jnp.dot(conv_w_ref[...], patches_ref[...],
                     preferred_element_type=jnp.float32)            # [OC, B*HW]

    # hook "conv1" (pre-ReLU): per-batch static 128-aligned lane slices ->
    # plain unmasked stores, no transpose / relayout.
    for b in range(B):
        conv1_ref[b * OC:(b + 1) * OC, :] = conv_t[:, b * HW:(b + 1) * HW]

    # ReLU + global average pool.  The per-batch averaging mask is built
    # in-kernel from iota (no HBM operand / input DMA); one tiny MXU pass.
    # (On v5e this could instead be a per-batch XLU lane reduction; at this
    #  size either option is far off the critical path.)
    relu_t = jnp.maximum(conv_t, 0.0)
    row_ids = lax.broadcasted_iota(jnp.int32, (B, B * HW), 0)
    col_ids = lax.broadcasted_iota(jnp.int32, (B, B * HW), 1)
    lo = row_ids * HW
    pool_mat = jnp.where((col_ids >= lo) & (col_ids < lo + HW), 1.0 / HW, 0.0)
    pooled = lax.dot_general(pool_mat, relu_t,
                             dimension_numbers=(((1,), (1,)), ((), ())),
                             preferred_element_type=jnp.float32)    # [B, OC]

    # fc1 / fc2 against zero-extended (lane-padded) weights from the slab:
    # every GEMM stays 128 lanes wide, so fc1/fc2 need no lane slicing and
    # their stores are unmasked.
    fc1_w = slab_ref[0:OC, :]                        # [OC, 128]
    fc1_b = slab_ref[bias_off:bias_off + 1, :]       # [1, 128]
    fc2_b = slab_ref[bias_off + 1:bias_off + 2, :]   # [1, 128]
    fc2_w = slab_ref[fc2w_off:fc2w_off + LANES, :]   # [128, 128]

    fc1_full = jnp.dot(pooled, fc1_w,
                       preferred_element_type=jnp.float32) + fc1_b   # [B, 128]
    fc2_full = jnp.dot(jnp.maximum(fc1_full, 0.0), fc2_w,
                       preferred_element_type=jnp.float32) + fc2_b   # [B, 128]

    # Single lane-dense packed output block -> one writeback DMA.
    packed_ref[...] = jnp.zeros(packed_ref.shape, packed_ref.dtype)
    packed_ref[0:B, 0:OC] = pooled        # only remaining masked vst (OC lanes)
    packed_ref[SEC:SEC + B, :] = fc1_full
    packed_ref[2 * SEC:2 * SEC + B, :] = fc2_full


# ------------------------ FeatureExtractor.forward ------------------------- #

@functools.partial(jax.jit,
                   static_argnames=("attrs", "penultimate_only", "return_inputs"))
def feature_extractor_forward(params, x_nchw, attrs=ATTRS,
                              penultimate_only=False, return_inputs=False):
    """Emulates FeatureExtractor(model, attrs).forward(x) for the synthetic model."""
    if return_inputs:
        # TODO(synk): return_inputs=True (hook *inputs*) not wired; outputs only.
        raise NotImplementedError("return_inputs=True is not implemented")

    B, C, H, W = x_nchw.shape
    OC = params["conv1_w"].shape[0]
    HID = params["fc1_w"].shape[1]
    NCLS = params["fc2_w"].shape[1]
    HW = H * W
    K = 9 * C                      # im2col contraction length
    K_pad = _round_up(K + 1, 8)    # +1 all-ones row that folds the conv bias
    f32 = jnp.float32

    # --- im2col in ONE fused op ---------------------------------------------
    # [B, 9*C, H, W] with output-channel ordering (c, kh, kw), which matches
    # conv1_w.reshape(OC, 9*C) exactly.
    patches = lax.conv_general_dilated_patches(
        x_nchw.astype(f32), filter_shape=(3, 3), window_strides=(1, 1),
        padding=((1, 1), (1, 1)), precision=lax.Precision.HIGHEST)
    patches_t = jnp.transpose(patches, (1, 0, 2, 3)).reshape(K, B * HW)
    patches_aug = jnp.concatenate(
        [patches_t,
         jnp.ones((1, B * HW), f32),                    # bias row
         jnp.zeros((K_pad - K - 1, B * HW), f32)],
        axis=0)                                          # [K_pad, B*HW]

    conv_w_aug = jnp.concatenate(
        [params["conv1_w"].reshape(OC, K).astype(f32),
         params["conv1_b"].reshape(OC, 1).astype(f32),  # bias column
         jnp.zeros((OC, K_pad - K - 1), f32)],
        axis=1)                                          # [OC, K_pad]

    # --- one lane-padded parameter slab for all fc params (single DMA) ------
    OC_pad = _round_up(OC, 8)
    bias_off = OC_pad
    fc2w_off = OC_pad + 8
    slab = jnp.zeros((fc2w_off + LANES, LANES), f32)
    slab = slab.at[0:OC, 0:HID].set(params["fc1_w"].astype(f32))
    slab = slab.at[bias_off, 0:HID].set(params["fc1_b"].astype(f32))
    slab = slab.at[bias_off + 1, 0:NCLS].set(params["fc2_b"].astype(f32))
    slab = slab.at[fc2w_off:fc2w_off + HID, 0:NCLS].set(params["fc2_w"].astype(f32))

    SEC = _round_up(max(B, 8), 8)   # 8-row-aligned section per small hook tensor

    kernel = functools.partial(
        fused_feature_kernel, B=B, OC=OC, HW=HW, SEC=SEC,
        bias_off=bias_off, fc2w_off=fc2w_off)

    conv1_flat, packed = pl.pallas_call(
        kernel,
        out_shape=(
            jax.ShapeDtypeStruct((B * OC, HW), f32),       # conv1 hook (NCHW flat)
            jax.ShapeDtypeStruct((3 * SEC, LANES), f32),   # pool / fc1 / fc2 packed
        ),
        in_specs=[_vmem_spec()] * 3,
        out_specs=(_vmem_spec(), _vmem_spec()),
    )(patches_aug, conv_w_aug, slab)

    captured = {
        "conv1": conv1_flat.reshape(B, OC, H, W),           # metadata-only reshape
        "pool": packed[0:B, 0:OC].reshape(B, OC, 1, 1),
        "fc1": packed[SEC:SEC + B, 0:HID],
        "fc2": packed[2 * SEC:2 * SEC + B, 0:NCLS],
    }

    # order features like the hook-registration order (attrs order)
    features = {a: captured[a] for a in attrs if a in captured}

    if penultimate_only:
        features = {attrs[-2]: features[attrs[-2]]}
    if len(features) == 1:
        features = list(features.values())[0]
    return features


# ----------------------------- pure-JAX reference --------------------------- #

def _reference_forward(params, x_nchw):
    hp = lax.Precision.HIGHEST
    conv = lax.conv_general_dilated(
        x_nchw, params["conv1_w"], window_strides=(1, 1),
        padding=((1, 1), (1, 1)),
        dimension_numbers=("NCHW", "OIHW", "NCHW"), precision=hp)
    conv = conv + params["conv1_b"][None, :, None, None]
    pooled = jnp.mean(jnp.maximum(conv, 0.0), axis=(2, 3))
    fc1 = jnp.dot(pooled, params["fc1_w"], precision=hp) + params["fc1_b"]
    fc2 = jnp.dot(jnp.maximum(fc1, 0.0), params["fc2_w"], precision=hp) + params["fc2_b"]
    return {"conv1": conv, "pool": pooled[:, :, None, None],
            "fc1": fc1, "fc2": fc2}


# --------------------------------- main ------------------------------------ #

if __name__ == "__main__":
    B, C, H, W = 2, 4, 16, 16
    OC, HID, NCLS = 8, 32, 10

    key = jax.random.PRNGKey(0)
    kx, k1, k2, k3, k4, k5, k6 = jax.random.split(key, 7)

    x = jax.random.normal(kx, (B, C, H, W), dtype=jnp.float32)

    # Deterministic synthetic parameters (PyTorch shapes; fc weights stored [in, out]).
    params = {
        "conv1_w": 0.1 * jax.random.normal(k1, (OC, C, 3, 3), dtype=jnp.float32),
        "conv1_b": 0.1 * jax.random.normal(k2, (OC,), dtype=jnp.float32),
        "fc1_w":   0.1 * jax.random.normal(k3, (OC, HID), dtype=jnp.float32),
        "fc1_b":   0.1 * jax.random.normal(k4, (HID,), dtype=jnp.float32),
        "fc2_w":   0.1 * jax.random.normal(k5, (HID, NCLS), dtype=jnp.float32),
        "fc2_b":   0.1 * jax.random.normal(k6, (NCLS,), dtype=jnp.float32),
    }

    feats = feature_extractor_forward(params, x)
    feats = jax.block_until_ready(feats)

    assert isinstance(feats, dict)
    assert feats["conv1"].shape == (B, OC, H, W)
    assert feats["pool"].shape == (B, OC, 1, 1)
    assert feats["fc1"].shape == (B, HID)
    assert feats["fc2"].shape == (B, NCLS)

    ref = _reference_forward(params, x)
    for name in ATTRS:
        # Tightened from 1e-2 (both paths are f32-accumulated; remaining delta
        # is summation-order noise well below 1e-4).
        assert jnp.allclose(feats[name], ref[name], rtol=1e-4, atol=1e-4), name

    print("KERNEL_OK")
</pallas_src>

<mosaic_0001>
module attributes {stable_mosaic.version = 11 : i64} {
  func.func @fused_feature_kernel(%arg0: memref<40x512xf32, #tpu.memory_space<vmem>>, %arg1: memref<8x40xf32, #tpu.memory_space<vmem>>, %arg2: memref<144x128xf32, #tpu.memory_space<vmem>>, %arg3: memref<16x256xf32, #tpu.memory_space<vmem>>, %arg4: memref<24x128xf32, #tpu.memory_space<vmem>>) attributes {dimension_semantics = [], scalar_prefetch = 0 : i64, scratch_operands = 0 : i64, tpu.core_type = #tpu.core_type<tc>} {
    %c0 = arith.constant 0 : index
    %c0_0 = arith.constant 0 : index
    %0 = vector.load %arg1[%c0, %c0_0] : memref<8x40xf32, #tpu.memory_space<vmem>>, vector<8x40xf32>
    %c0_1 = arith.constant 0 : index
    %c0_2 = arith.constant 0 : index
    %1 = vector.load %arg0[%c0_1, %c0_2] : memref<40x512xf32, #tpu.memory_space<vmem>>, vector<40x512xf32>
    %cst = arith.constant dense<0.000000e+00> : vector<8x512xf32>
    %2 = tpu.matmul %0, %1, %cst {dimension_numbers = #tpu.dot_dimension_numbers<[1], [0], [0], [1], [0, 0, 1, 1], [], []>} : vector<8x40xf32>, vector<40x512xf32>, vector<8x512xf32> -> vector<8x512xf32>
    %3 = vector.extract_strided_slice %2 {offsets = [0, 0], sizes = [8, 256], strides = [1, 1]} : vector<8x512xf32> to vector<8x256xf32>
    %c0_3 = arith.constant 0 : index
    %c0_4 = arith.constant 0 : index
    %4 = vector.load %arg3[%c0_3, %c0_4] : memref<16x256xf32, #tpu.memory_space<vmem>>, vector<8x256xf32>
    tpu.vector_store %arg3[%c0_3, %c0_4], %3 {strides = array<i32>} : memref<16x256xf32, #tpu.memory_space<vmem>>, vector<8x256xf32>,
    %5 = vector.extract_strided_slice %2 {offsets = [0, 256], sizes = [8, 256], strides = [1, 1]} : vector<8x512xf32> to vector<8x256xf32>
    %c8 = arith.constant 8 : index
    %c0_5 = arith.constant 0 : index
    %6 = vector.load %arg3[%c8, %c0_5] : memref<16x256xf32, #tpu.memory_space<vmem>>, vector<8x256xf32>
    tpu.vector_store %arg3[%c8, %c0_5], %5 {strides = array<i32>} : memref<16x256xf32, #tpu.memory_space<vmem>>, vector<8x256xf32>,
    %cst_6 = arith.constant 0.000000e+00 : f32
    %7 = vector.broadcast %cst_6 : f32 to vector<8x512xf32>
    %8 = arith.maximumf %2, %7 : vector<8x512xf32>
    %9 = tpu.iota {dimensions = array<i32: 0>} : vector<2x512xi32>
    %10 = tpu.iota {dimensions = array<i32: 1>} : vector<2x512xi32>
    %c256_i32 = arith.constant 256 : i32
    %11 = vector.broadcast %c256_i32 : i32 to vector<2x512xi32>
    %12 = arith.muli %9, %11 : vector<2x512xi32>
    %13 = arith.cmpi sge, %10, %12 : vector<2x512xi32>
    %c256_i32_7 = arith.constant 256 : i32
    %14 = vector.broadcast %c256_i32_7 : i32 to vector<2x512xi32>
    %15 = arith.addi %12, %14 : vector<2x512xi32>
    %16 = arith.cmpi slt, %10, %15 : vector<2x512xi32>
    %17 = arith.andi %13, %16 : vector<2x512xi1>
    %cst_8 = arith.constant 3.906250e-03 : f32
    %cst_9 = arith.constant 0.000000e+00 : f32
    %18 = vector.broadcast %cst_8 : f32 to vector<2x512xf32>
    %19 = vector.broadcast %cst_9 : f32 to vector<2x512xf32>
    %20 = arith.select %17, %18, %19 : vector<2x512xi1>, vector<2x512xf32>
    %cst_10 = arith.constant dense<0.000000e+00> : vector<2x8xf32>
    %21 = tpu.matmul %20, %8, %cst_10 {dimension_numbers = #tpu.dot_dimension_numbers<[1], [1], [0], [0], [0, 0, 1, 0], [], []>} : vector<2x512xf32>, vector<8x512xf32>, vector<2x8xf32> -> vector<2x8xf32>
    %c0_11 = arith.constant 0 : index
    %c0_12 = arith.constant 0 : index
    %22 = vector.load %arg2[%c0_11, %c0_12] : memref<144x128xf32, #tpu.memory_space<vmem>>, vector<8x128xf32>
    %c8_13 = arith.constant 8 : index
    %c0_14 = arith.constant 0 : index
    %23 = vector.load %arg2[%c8_13, %c0_14] : memref<144x128xf32, #tpu.memory_space<vmem>>, vector<1x128xf32>
    %c9 = arith.constant 9 : index
    %c0_15 = arith.constant 0 : index
    %24 = vector.load %arg2[%c9, %c0_15] : memref<144x128xf32, #tpu.memory_space<vmem>>, vector<1x128xf32>
    %c16 = arith.constant 16 : index
    %c0_16 = arith.constant 0 : index
    %25 = vector.load %arg2[%c16, %c0_16] : memref<144x128xf32, #tpu.memory_space<vmem>>, vector<128x128xf32>
    %cst_17 = arith.constant dense<0.000000e+00> : vector<2x128xf32>
    %26 = tpu.matmul %21, %22, %cst_17 {dimension_numbers = #tpu.dot_dimension_numbers<[1], [0], [0], [1], [0, 0, 1, 1], [], []>} : vector<2x8xf32>, vector<8x128xf32>, vector<2x128xf32> -> vector<2x128xf32>
    %27 = vector.broadcast %23 : vector<1x128xf32> to vector<2x128xf32>
    %28 = arith.addf %26, %27 : vector<2x128xf32>
    %cst_18 = arith.constant 0.000000e+00 : f32
    %29 = vector.broadcast %cst_18 : f32 to vector<2x128xf32>
    %30 = arith.maximumf %28, %29 : vector<2x128xf32>
    %cst_19 = arith.constant dense<0.000000e+00> : vector<2x128xf32>
    %31 = tpu.matmul %30, %25, %cst_19 {dimension_numbers = #tpu.dot_dimension_numbers<[1], [0], [0], [1], [0, 0, 1, 1], [], []>} : vector<2x128xf32>, vector<128x128xf32>, vector<2x128xf32> -> vector<2x128xf32>
    %32 = vector.broadcast %24 : vector<1x128xf32> to vector<2x128xf32>
    %33 = arith.addf %31, %32 : vector<2x128xf32>
    %cst_20 = arith.constant 0.000000e+00 : f32
    %34 = vector.broadcast %cst_20 : f32 to vector<24x128xf32>
    %c0_21 = arith.constant 0 : index
    %c0_22 = arith.constant 0 : index
    %35 = vector.load %arg4[%c0_21, %c0_22] : memref<24x128xf32, #tpu.memory_space<vmem>>, vector<24x128xf32>
    tpu.vector_store %arg4[%c0_21, %c0_22], %34 {strides = array<i32>} : memref<24x128xf32, #tpu.memory_space<vmem>>, vector<24x128xf32>,
    %c0_23 = arith.constant 0 : index
    %c0_24 = arith.constant 0 : index
    %36 = vector.load %arg4[%c0_23, %c0_24] : memref<24x128xf32, #tpu.memory_space<vmem>>, vector<2x8xf32>
    tpu.vector_store %arg4[%c0_23, %c0_24], %21 {strides = array<i32>} : memref<24x128xf32, #tpu.memory_space<vmem>>, vector<2x8xf32>,
    %c8_25 = arith.constant 8 : index
    %c0_26 = arith.constant 0 : index
    %37 = vector.load %arg4[%c8_25, %c0_26] : memref<24x128xf32, #tpu.memory_space<vmem>>, vector<2x128xf32>
    tpu.vector_store %arg4[%c8_25, %c0_26], %28 {strides = array<i32>} : memref<24x128xf32, #tpu.memory_space<vmem>>, vector<2x128xf32>,
    %c16_27 = arith.constant 16 : index
    %c0_28 = arith.constant 0 : index
    %38 = vector.load %arg4[%c16_27, %c0_28] : memref<24x128xf32, #tpu.memory_space<vmem>>, vector<2x128xf32>
    tpu.vector_store %arg4[%c16_27, %c0_28], %33 {strides = array<i32>} : memref<24x128xf32, #tpu.memory_space<vmem>>, vector<2x128xf32>,
    return
  }
}

</mosaic_0001>

<llo_original>
// kernel: feature_extractor_forward.1
$region0: #{feature_extractor_forward.1}
  #allocation0 [shape = 'u32[]', space=smem, size = 0x4, offset = 0x4, fixed_abs, tag = 'smem constant byte address 0x4 - core index']
  #allocation1 [shape = 'u32[144,128]{1,0:T(1,128)}', space=vmem, size = 0x12000, scoped, tag = 'internal scratch']
  %s0 = inlined_call_operand.vmem [shape: f32[40,512], index: 0, kind: input, shape index: {}]
  %s1 = inlined_call_operand.vmem [shape: f32[8,40], index: 1, kind: input, shape index: {}]
  %s2 = inlined_call_operand.vmem [shape: f32[144,128], index: 2, kind: input, shape index: {}]
  %s3 = inlined_call_operand.vmem [shape: f32[16,256], index: 3, kind: output, shape index: {0}]
  %s4 = inlined_call_operand.vmem [shape: f32[24,128], index: 4, kind: output, shape index: {1}]
  %5 = xla_tuple %s3, %s4
  %s6 = sld [smem:[#allocation0]]
  $region30: #{feature_extractor_forward.1} parent=0
    _
  %s8 = ssub.s32 1, %s6
  %s9 = scalar_select 0, %s8, %s6
  // Predicated region
  $region2: #{feature_extractor_forward.1} parent=0 // pred_check
    _
  $region3: #{feature_extractor_forward.1} parent=0 // pred_check_branch
    %11 = sbr.rel (0) target = $region5
  $region4: #{feature_extractor_forward.1} parent=0 // pred_region
    _
  $region5: #{feature_extractor_forward.1} parent=0 // pred_fallthru
    _
  // Predicated region
  $region6: #{feature_extractor_forward.1} parent=0 // pred_check
    _
  $region7: #{feature_extractor_forward.1} parent=0 // pred_check_branch
    %13 = sbr.rel (0) target = $region9
  $region8: #{feature_extractor_forward.1} parent=0 // pred_region
    _
  $region9: #{feature_extractor_forward.1} parent=0 // pred_fallthru
    _
  // Predicated region
  $region10: #{feature_extractor_forward.1} parent=0 // pred_check
    _
  $region11: #{feature_extractor_forward.1} parent=0 // pred_check_branch
    %15 = sbr.rel (0) target = $region13
  $region12: #{feature_extractor_forward.1} parent=0 // pred_region
    _
  $region13: #{feature_extractor_forward.1} parent=0 // pred_fallthru
    _
  %v16 = vld [vmem:[%s1] sm:$0xff]
  %v17 = vld [vmem:[%s0] sm:$0xff]
  %v18 = vld [vmem:[%s0 + $0x8] sm:$0xff]
  %v19 = vld [vmem:[%s0 + $0x10] sm:$0xff]
  %v20 = vld [vmem:[%s0 + $0x18] sm:$0xff]
  %v21 = vld [vmem:[%s0 + $0x20] sm:$0xff]
  %v22 = vld [vmem:[%s0 + $0x28] sm:$0xff]
  %v23 = vld [vmem:[%s0 + $0x30] sm:$0xff]
  %v24 = vld [vmem:[%s0 + $0x38] sm:$0xff]
  %v25 = vld [vmem:[%s0 + $0x40] sm:$0xff]
  %v26 = vld [vmem:[%s0 + $0x48] sm:$0xff]
  %v27 = vld [vmem:[%s0 + $0x50] sm:$0xff]
  %v28 = vld [vmem:[%s0 + $0x58] sm:$0xff]
  %v29 = vld [vmem:[%s0 + $0x60] sm:$0xff]
  %v30 = vld [vmem:[%s0 + $0x68] sm:$0xff]
  %v31 = vld [vmem:[%s0 + $0x70] sm:$0xff]
  %v32 = vld [vmem:[%s0 + $0x78] sm:$0xff]
  %v33 = vld [vmem:[%s0 + $0x80] sm:$0xff]
  %v34 = vld [vmem:[%s0 + $0x88] sm:$0xff]
  %v35 = vld [vmem:[%s0 + $0x90] sm:$0xff]
  %v36 = vld [vmem:[%s0 + $0x98] sm:$0xff]
  %vm37 = vcmask 326656
  %v39 = vsel %vm37, %v16, 0
  %41 = vmatprep.subr.mxu0 0.0
  %42 = vmatpush1.msra.mxu0 0.0
  %43 = vmatprep.subr.mxu0 0.0
  %44 = vmatpush1.msra.mxu0 0.0
  %45 = vmatprep.subr.mxu0 0.0
  %46 = vmatpush1.msra.mxu0 0.0
  %47 = vmatprep.subr.mxu0 0.0
  %48 = vmatpush1.msra.mxu0 0.0
  %49 = vmatprep.subr.mxu0 0.0
  %50 = vmatpush1.msra.mxu0 0.0
  %51 = vmatprep.subr.mxu0 0.0
  %52 = vmatpush1.msra.mxu0 0.0
  %53 = vmatprep.subr.mxu0 0.0
  %54 = vmatpush1.msra.mxu0 0.0
  %55 = vmatprep.subr.mxu0 0.0
  %56 = vmatpush1.msra.mxu0 0.0
  %57 = vmatprep.subr.mxu0 0.0
  %58 = vmatpush1.msra.mxu0 0.0
  %59 = vmatprep.subr.mxu0 0.0
  %60 = vmatpush1.msra.mxu0 0.0
  %61 = vmatprep.subr.mxu0 0.0
  %62 = vmatpush1.msra.mxu0 0.0
  %63 = vmatprep.subr.mxu0 %v34
  %64 = vmatpush1.msra.mxu0 %v33
  %65 = vmatprep.subr.mxu0 %v30
  %66 = vmatpush1.msra.mxu0 %v29
  %67 = vmatprep.subr.mxu0 %v26
  %68 = vmatpush1.msra.mxu0 %v25
  %69 = vmatprep.subr.mxu0 %v22
  %70 = vmatpush1.msra.mxu0 %v21
  %71 = vmatprep.subr.mxu0 %v18
  %72 = vmatpush1.msra.mxu0 %v17
  %73 = vmatprep.subr.mxu0 0.0
  %74 = vmatpush2.msra.mxu0 0.0
  %75 = vmatprep.subr.mxu0 0.0
  %76 = vmatpush2.msra.mxu0 0.0
  %77 = vmatprep.subr.mxu0 0.0
  %78 = vmatpush2.msra.mxu0 0.0
  %79 = vmatprep.subr.mxu0 0.0
  %80 = vmatpush2.msra.mxu0 0.0
  %81 = vmatprep.subr.mxu0 0.0
  %82 = vmatpush2.msra.mxu0 0.0
  %83 = vmatprep.subr.mxu0 0.0
  %84 = vmatpush2.msra.mxu0 0.0
  %85 = vmatprep.subr.mxu0 0.0
  %86 = vmatpush2.msra.mxu0 0.0
  %87 = vmatprep.subr.mxu0 0.0
  %88 = vmatpush2.msra.mxu0 0.0
  %89 = vmatprep.subr.mxu0 0.0
  %90 = vmatpush2.msra.mxu0 0.0
  %91 = vmatprep.subr.mxu0 0.0
  %92 = vmatpush2.msra.mxu0 0.0
  %93 = vmatprep.subr.mxu0 0.0
  %94 = vmatpush2.msra.mxu0 0.0
  %95 = vmatprep.subr.mxu0 0.0
  %96 = vmatpush2.msra.mxu0 0.0
  %97 = vmatprep.subr.mxu0 0.0
  %98 = vmatpush2.msra.mxu0 0.0
  %99 = vmatprep.subr.mxu0 0.0
  %100 = vmatpush2.msra.mxu0 0.0
  %101 = vmatprep.subr.mxu0 0.0
  %102 = vmatpush2.msra.mxu0 0.0
  %103 = vmatprep.subr.mxu0 0.0
  %104 = vmatpush2.msra.mxu0 0.0
  %105 = vmatprep.mubr.f32.mxu0 0.0
  %106 = vmatmul.mubr.f32.gmra.mxu0 %v39
  %v107 = vpop.f32.mrf.mxu0
  %v108 = vadd.f32 0.0, %v107
  %v109 = vpop.f32.mrf.mxu0
  %v110 = vadd.f32 0.0, %v109
  %111 = vdwg.mxu0
  %112 = vmatprep.subr.mxu0 0.0
  %113 = vmatpush1.msra.mxu0 0.0
  %114 = vmatprep.subr.mxu0 0.0
  %115 = vmatpush1.msra.mxu0 0.0
  %116 = vmatprep.subr.mxu0 0.0
  %117 = vmatpush1.msra.mxu0 0.0
  %118 = vmatprep.subr.mxu0 0.0
  %119 = vmatpush1.msra.mxu0 0.0
  %120 = vmatprep.subr.mxu0 0.0
  %121 = vmatpush1.msra.mxu0 0.0
  %122 = vmatprep.subr.mxu0 0.0
  %123 = vmatpush1.msra.mxu0 0.0
  %124 = vmatprep.subr.mxu0 0.0
  %125 = vmatpush1.msra.mxu0 0.0
  %126 = vmatprep.subr.mxu0 0.0
  %127 = vmatpush1.msra.mxu0 0.0
  %128 = vmatprep.subr.mxu0 0.0
  %129 = vmatpush1.msra.mxu0 0.0
  %130 = vmatprep.subr.mxu0 0.0
  %131 = vmatpush1.msra.mxu0 0.0
  %132 = vmatprep.subr.mxu0 0.0
  %133 = vmatpush1.msra.mxu0 0.0
  %134 = vmatprep.subr.mxu0 %v36
  %135 = vmatpush1.msra.mxu0 %v35
  %136 = vmatprep.subr.mxu0 %v32
  %137 = vmatpush1.msra.mxu0 %v31
  %138 = vmatprep.subr.mxu0 %v28
  %139 = vmatpush1.msra.mxu0 %v27
  %140 = vmatprep.subr.mxu0 %v24
  %141 = vmatpush1.msra.mxu0 %v23
  %142 = vmatprep.subr.mxu0 %v20
  %143 = vmatpush1.msra.mxu0 %v19
  %144 = vmatprep.subr.mxu0 0.0
  %145 = vmatpush2.msra.mxu0 0.0
  %146 = vmatprep.subr.mxu0 0.0
  %147 = vmatpush2.msra.mxu0 0.0
  %148 = vmatprep.subr.mxu0 0.0
  %149 = vmatpush2.msra.mxu0 0.0
  %150 = vmatprep.subr.mxu0 0.0
  %151 = vmatpush2.msra.mxu0 0.0
  %152 = vmatprep.subr.mxu0 0.0
  %153 = vmatpush2.msra.mxu0 0.0
  %154 = vmatprep.subr.mxu0 0.0
  %155 = vmatpush2.msra.mxu0 0.0
  %156 = vmatprep.subr.mxu0 0.0
  %157 = vmatpush2.msra.mxu0 0.0
  %158 = vmatprep.subr.mxu0 0.0
  %159 = vmatpush2.msra.mxu0 0.0
  %160 = vmatprep.subr.mxu0 0.0
  %161 = vmatpush2.msra.mxu0 0.0
  %162 = vmatprep.subr.mxu0 0.0
  %163 = vmatpush2.msra.mxu0 0.0
  %164 = vmatprep.subr.mxu0 0.0
  %165 = vmatpush2.msra.mxu0 0.0
  %166 = vmatprep.subr.mxu0 0.0
  %167 = vmatpush2.msra.mxu0 0.0
  %168 = vmatprep.subr.mxu0 0.0
  %169 = vmatpush2.msra.mxu0 0.0
  %170 = vmatprep.subr.mxu0 0.0
  %171 = vmatpush2.msra.mxu0 0.0
  %172 = vmatprep.subr.mxu0 0.0
  %173 = vmatpush2.msra.mxu0 0.0
  %174 = vmatprep.subr.mxu0 0.0
  %175 = vmatpush2.msra.mxu0 0.0
  %176 = vmatprep.mubr.f32.mxu0 0.0
  %177 = vmatmul.mubr.f32.gmra.mxu0 %v39
  %v178 = vpop.f32.mrf.mxu0
  %v179 = vadd.f32 0.0, %v178
  %v180 = vpop.f32.mrf.mxu0
  %v181 = vadd.f32 0.0, %v180
  %182 = vdwg.mxu0
  %183 = vst [vmem:[%s3] sm:$0xff] %v108
  %184 = vst [vmem:[%s3 + $0x8] sm:$0xff] %v110
  %185 = vst [vmem:[%s3 + $0x10] sm:$0xff] %v179
  %186 = vst [vmem:[%s3 + $0x18] sm:$0xff] %v181
  %v187 = vmax.f32 %v108, 0.0
  %v188 = vmax.f32 %v110, 0.0
  %v189 = vmax.f32 %v179, 0.0
  %v190 = vmax.f32 %v181, 0.0
  %v191 = vlaneseq
  %v192 = vshrl.u32 %v191, 7
  %v193 = vlaneseq
  %v194 = vand.u32 %v193, 127
  %v195 = vadd.s32 %v194, 128
  %v196 = vadd.s32 %v194, 256
  %v197 = vadd.s32 %v194, 384
  %v198 = vmul.u32 %v192, 256
  %vm199 = vcmp.ge.s32.totalorder %v194, %v198
  %vm200 = vcmp.ge.s32.totalorder %v195, %v198
  %vm201 = vcmp.ge.s32.totalorder %v196, %v198
  %vm202 = vcmp.ge.s32.totalorder %v197, %v198
  %v203 = vadd.s32 %v198, 256
  %vm204 = vcmp.lt.s32.totalorder %v194, %v203
  %vm205 = vcmp.lt.s32.totalorder %v195, %v203
  %vm206 = vcmp.lt.s32.totalorder %v196, %v203
  %vm207 = vcmp.lt.s32.totalorder %v197, %v203
  %vm208 = vmand %vm199, %vm204
  %vm209 = vmand %vm200, %vm205
  %vm210 = vmand %vm201, %vm206
  %vm211 = vmand %vm202, %vm207
  %v212 = vsel %vm208, 0.00390625, 0.0
  %v213 = vsel %vm209, 0.00390625, 0.0
  %v214 = vsel %vm210, 0.00390625, 0.0
  %v215 = vsel %vm211, 0.00390625, 0.0
  %216 = vmatprep.subr.mxu0 0.0
  %217 = vmatpush1.xpose.msra.mxu0 0.0
  %218 = vmatprep.subr.mxu0 0.0
  %219 = vmatpush1.xpose.msra.mxu0 0.0
  %220 = vmatprep.subr.mxu0 0.0
  %221 = vmatpush1.xpose.msra.mxu0 0.0
  %222 = vmatprep.subr.mxu0 0.0
  %223 = vmatpush1.xpose.msra.mxu0 0.0
  %224 = vmatprep.subr.mxu0 0.0
  %225 = vmatpush1.xpose.msra.mxu0 0.0
  %226 = vmatprep.subr.mxu0 0.0
  %227 = vmatpush1.xpose.msra.mxu0 0.0
  %228 = vmatprep.subr.mxu0 0.0
  %229 = vmatpush1.xpose.msra.mxu0 0.0
  %230 = vmatprep.subr.mxu0 0.0
  %231 = vmatpush1.xpose.msra.mxu0 0.0
  %232 = vmatprep.subr.mxu0 0.0
  %233 = vmatpush1.xpose.msra.mxu0 0.0
  %234 = vmatprep.subr.mxu0 0.0
  %235 = vmatpush1.xpose.msra.mxu0 0.0
  %236 = vmatprep.subr.mxu0 0.0
  %237 = vmatpush1.xpose.msra.mxu0 0.0
  %238 = vmatprep.subr.mxu0 0.0
  %239 = vmatpush1.xpose.msra.mxu0 0.0
  %240 = vmatprep.subr.mxu0 0.0
  %241 = vmatpush1.xpose.msra.mxu0 0.0
  %242 = vmatprep.subr.mxu0 0.0
  %243 = vmatpush1.xpose.msra.mxu0 0.0
  %244 = vmatprep.subr.mxu0 0.0
  %245 = vmatpush1.xpose.msra.mxu0 0.0
  %246 = vmatprep.subr.mxu0 %v188
  %247 = vmatpush1.xpose.msra.mxu0 %v187
  %248 = vmatprep.subr.mxu0 0.0
  %249 = vmatpush2.xpose.msra.mxu0 0.0
  %250 = vmatprep.subr.mxu0 0.0
  %251 = vmatpush2.xpose.msra.mxu0 0.0
  %252 = vmatprep.subr.mxu0 0.0
  %253 = vmatpush2.xpose.msra.mxu0 0.0
  %254 = vmatprep.subr.mxu0 0.0
  %255 = vmatpush2.xpose.msra.mxu0 0.0
  %256 = vmatprep.subr.mxu0 0.0
  %257 = vmatpush2.xpose.msra.mxu0 0.0
  %258 = vmatprep.subr.mxu0 0.0
  %259 = vmatpush2.xpose.msra.mxu0 0.0
  %260 = vmatprep.subr.mxu0 0.0
  %261 = vmatpush2.xpose.msra.mxu0 0.0
  %262 = vmatprep.subr.mxu0 0.0
  %263 = vmatpush2.xpose.msra.mxu0 0.0
  %264 = vmatprep.subr.mxu0 0.0
  %265 = vmatpush2.xpose.msra.mxu0 0.0
  %266 = vmatprep.subr.mxu0 0.0
  %267 = vmatpush2.xpose.msra.mxu0 0.0
  %268 = vmatprep.subr.mxu0 0.0
  %269 = vmatpush2.xpose.msra.mxu0 0.0
  %270 = vmatprep.subr.mxu0 0.0
  %271 = vmatpush2.xpose.msra.mxu0 0.0
  %272 = vmatprep.subr.mxu0 0.0
  %273 = vmatpush2.xpose.msra.mxu0 0.0
  %274 = vmatprep.subr.mxu0 0.0
  %275 = vmatpush2.xpose.msra.mxu0 0.0
  %276 = vmatprep.subr.mxu0 0.0
  %277 = vmatpush2.xpose.msra.mxu0 0.0
  %278 = vmatprep.subr.mxu0 0.0
  %279 = vmatpush2.xpose.msra.mxu0 0.0
  %280 = vmatprep.mubr.f32.mxu0 %v213
  %281 = vmatmul.mubr.f32.gmra.mxu0 %v212
  %v282 = vpop.f32.mrf.mxu0
  %v283 = vadd.f32 0.0, %v282
  %v284 = vpop.f32.mrf.mxu0
  %285 = vdwg.mxu0
  %286 = vmatprep.subr.mxu0 0.0
  %287 = vmatpush1.xpose.msra.mxu0 0.0
  %288 = vmatprep.subr.mxu0 0.0
  %289 = vmatpush1.xpose.msra.mxu0 0.0
  %290 = vmatprep.subr.mxu0 0.0
  %291 = vmatpush1.xpose.msra.mxu0 0.0
  %292 = vmatprep.subr.mxu0 0.0
  %293 = vmatpush1.xpose.msra.mxu0 0.0
  %294 = vmatprep.subr.mxu0 0.0
  %295 = vmatpush1.xpose.msra.mxu0 0.0
  %296 = vmatprep.subr.mxu0 0.0
  %297 = vmatpush1.xpose.msra.mxu0 0.0
  %298 = vmatprep.subr.mxu0 0.0
  %299 = vmatpush1.xpose.msra.mxu0 0.0
  %300 = vmatprep.subr.mxu0 0.0
  %301 = vmatpush1.xpose.msra.mxu0 0.0
  %302 = vmatprep.subr.mxu0 0.0
  %303 = vmatpush1.xpose.msra.mxu0 0.0
  %304 = vmatprep.subr.mxu0 0.0
  %305 = vmatpush1.xpose.msra.mxu0 0.0
  %306 = vmatprep.subr.mxu0 0.0
  %307 = vmatpush1.xpose.msra.mxu0 0.0
  %308 = vmatprep.subr.mxu0 0.0
  %309 = vmatpush1.xpose.msra.mxu0 0.0
  %310 = vmatprep.subr.mxu0 0.0
  %311 = vmatpush1.xpose.msra.mxu0 0.0
  %312 = vmatprep.subr.mxu0 0.0
  %313 = vmatpush1.xpose.msra.mxu0 0.0
  %314 = vmatprep.subr.mxu0 0.0
  %315 = vmatpush1.xpose.msra.mxu0 0.0
  %316 = vmatprep.subr.mxu0 %v190
  %317 = vmatpush1.xpose.msra.mxu0 %v189
  %318 = vmatprep.subr.mxu0 0.0
  %319 = vmatpush2.xpose.msra.mxu0 0.0
  %320 = vmatprep.subr.mxu0 0.0
  %321 = vmatpush2.xpose.msra.mxu0 0.0
  %322 = vmatprep.subr.mxu0 0.0
  %323 = vmatpush2.xpose.msra.mxu0 0.0
  %324 = vmatprep.subr.mxu0 0.0
  %325 = vmatpush2.xpose.msra.mxu0 0.0
  %326 = vmatprep.subr.mxu0 0.0
  %327 = vmatpush2.xpose.msra.mxu0 0.0
  %328 = vmatprep.subr.mxu0 0.0
  %329 = vmatpush2.xpose.msra.mxu0 0.0
  %330 = vmatprep.subr.mxu0 0.0
  %331 = vmatpush2.xpose.msra.mxu0 0.0
  %332 = vmatprep.subr.mxu0 0.0
  %333 = vmatpush2.xpose.msra.mxu0 0.0
  %334 = vmatprep.subr.mxu0 0.0
  %335 = vmatpush2.xpose.msra.mxu0 0.0
  %336 = vmatprep.subr.mxu0 0.0
  %337 = vmatpush2.xpose.msra.mxu0 0.0
  %338 = vmatprep.subr.mxu0 0.0
  %339 = vmatpush2.xpose.msra.mxu0 0.0
  %340 = vmatprep.subr.mxu0 0.0
  %341 = vmatpush2.xpose.msra.mxu0 0.0
  %342 = vmatprep.subr.mxu0 0.0
  %343 = vmatpush2.xpose.msra.mxu0 0.0
  %344 = vmatprep.subr.mxu0 0.0
  %345 = vmatpush2.xpose.msra.mxu0 0.0
  %346 = vmatprep.subr.mxu0 0.0
  %347 = vmatpush2.xpose.msra.mxu0 0.0
  %348 = vmatprep.subr.mxu0 0.0
  %349 = vmatpush2.xpose.msra.mxu0 0.0
  %350 = vmatprep.mubr.f32.mxu0 %v215
  %351 = vmatmul.mubr.f32.gmra.mxu0 %v214
  %v352 = vpop.f32.mrf.mxu0
  %v353 = vadd.f32 %v283, %v352
  %v354 = vpop.f32.mrf.mxu0
  %355 = vdwg.mxu0
  %v356 = vld [vmem:[%s2] sm:$0xff]
  %v357 = vld [vmem:[%s2 + $0x8] sm:$0x1]
  %v358 = vld [vmem:[%s2 + $0x9] sm:$0x1]
  %v359 = vld [vmem:[%s2 + $0x10] sm:$0xff]
  %v360 = vld [vmem:[%s2 + $0x18] sm:$0xff]
  %v361 = vld [vmem:[%s2 + $0x20] sm:$0xff]
  %v362 = vld [vmem:[%s2 + $0x28] sm:$0xff]
  %v363 = vld [vmem:[%s2 + $0x30] sm:$0xff]
  %v364 = vld [vmem:[%s2 + $0x38] sm:$0xff]
  %v365 = vld [vmem:[%s2 + $0x40] sm:$0xff]
  %v366 = vld [vmem:[%s2 + $0x48] sm:$0xff]
  %v367 = vld [vmem:[%s2 + $0x50] sm:$0xff]
  %v368 = vld [vmem:[%s2 + $0x58] sm:$0xff]
  %v369 = vld [vmem:[%s2 + $0x60] sm:$0xff]
  %v370 = vld [vmem:[%s2 + $0x68] sm:$0xff]
  %v371 = vld [vmem:[%s2 + $0x70] sm:$0xff]
  %v372 = vld [vmem:[%s2 + $0x78] sm:$0xff]
  %v373 = vld [vmem:[%s2 + $0x80] sm:$0xff]
  %v374 = vld [vmem:[%s2 + $0x88] sm:$0xff]
  %v375 = vlaneseq
  %v376 = vshrl.u32 %v375, 7
  %v377 = vsub.s32 0, %v376
  %v378 = vrot.slane %v357, %v377
  %vm379 = vcmask 64512
  %v381 = vsel %vm379, %v353, 0
  %383 = vmatprep.subr.mxu0 0.0
  %384 = vmatpush1.msra.mxu0 0.0
  %385 = vmatprep.subr.mxu0 0.0
  %386 = vmatpush1.msra.mxu0 0.0
  %387 = vmatprep.subr.mxu0 0.0
  %388 = vmatpush1.msra.mxu0 0.0
  %389 = vmatprep.subr.mxu0 0.0
  %390 = vmatpush1.msra.mxu0 0.0
  %391 = vmatprep.subr.mxu0 0.0
  %392 = vmatpush1.msra.mxu0 0.0
  %393 = vmatprep.subr.mxu0 0.0
  %394 = vmatpush1.msra.mxu0 0.0
  %395 = vmatprep.subr.mxu0 0.0
  %396 = vmatpush1.msra.mxu0 0.0
  %397 = vmatprep.subr.mxu0 0.0
  %398 = vmatpush1.msra.mxu0 0.0
  %399 = vmatprep.subr.mxu0 0.0
  %400 = vmatpush1.msra.mxu0 0.0
  %401 = vmatprep.subr.mxu0 0.0
  %402 = vmatpush1.msra.mxu0 0.0
  %403 = vmatprep.subr.mxu0 0.0
  %404 = vmatpush1.msra.mxu0 0.0
  %405 = vmatprep.subr.mxu0 0.0
  %406 = vmatpush1.msra.mxu0 0.0
  %407 = vmatprep.subr.mxu0 0.0
  %408 = vmatpush1.msra.mxu0 0.0
  %409 = vmatprep.subr.mxu0 0.0
  %410 = vmatpush1.msra.mxu0 0.0
  %411 = vmatprep.subr.mxu0 0.0
  %412 = vmatpush1.msra.mxu0 0.0
  %413 = vmatprep.subr.mxu0 0.0
  %414 = vmatpush1.msra.mxu0 %v356
  %415 = vmatprep.subr.mxu0 0.0
  %416 = vmatpush2.msra.mxu0 0.0
  %417 = vmatprep.subr.mxu0 0.0
  %418 = vmatpush2.msra.mxu0 0.0
  %419 = vmatprep.subr.mxu0 0.0
  %420 = vmatpush2.msra.mxu0 0.0
  %421 = vmatprep.subr.mxu0 0.0
  %422 = vmatpush2.msra.mxu0 0.0
  %423 = vmatprep.subr.mxu0 0.0
  %424 = vmatpush2.msra.mxu0 0.0
  %425 = vmatprep.subr.mxu0 0.0
  %426 = vmatpush2.msra.mxu0 0.0
  %427 = vmatprep.subr.mxu0 0.0
  %428 = vmatpush2.msra.mxu0 0.0
  %429 = vmatprep.subr.mxu0 0.0
  %430 = vmatpush2.msra.mxu0 0.0
  %431 = vmatprep.subr.mxu0 0.0
  %432 = vmatpush2.msra.mxu0 0.0
  %433 = vmatprep.subr.mxu0 0.0
  %434 = vmatpush2.msra.mxu0 0.0
  %435 = vmatprep.subr.mxu0 0.0
  %436 = vmatpush2.msra.mxu0 0.0
  %437 = vmatprep.subr.mxu0 0.0
  %438 = vmatpush2.msra.mxu0 0.0
  %439 = vmatprep.subr.mxu0 0.0
  %440 = vmatpush2.msra.mxu0 0.0
  %441 = vmatprep.subr.mxu0 0.0
  %442 = vmatpush2.msra.mxu0 0.0
  %443 = vmatprep.subr.mxu0 0.0
  %444 = vmatpush2.msra.mxu0 0.0
  %445 = vmatprep.subr.mxu0 0.0
  %446 = vmatpush2.msra.mxu0 0.0
  %447 = vmatprep.mubr.f32.mxu0 0.0
  %448 = vmatmul.mubr.f32.gmra.mxu0 %v381
  %v449 = vpop.f32.mrf.mxu0
  %v450 = vadd.f32 %v378, %v449
  %v451 = vpop.f32.mrf.mxu0
  %452 = vdwg.mxu0
  %v453 = vmax.f32 %v450, 0.0
  %v454 = vlaneseq
  %v455 = vshrl.u32 %v454, 7
  %v456 = vsub.s32 0, %v455
  %v457 = vrot.slane %v358, %v456
  %458 = vmatprep.subr.mxu0 0.0
  %459 = vmatpush1.msra.mxu0 %v374
  %460 = vmatprep.subr.mxu0 0.0
  %461 = vmatpush1.msra.mxu0 %v373
  %462 = vmatprep.subr.mxu0 0.0
  %463 = vmatpush1.msra.mxu0 %v372
  %464 = vmatprep.subr.mxu0 0.0
  %465 = vmatpush1.msra.mxu0 %v371
  %466 = vmatprep.subr.mxu0 0.0
  %467 = vmatpush1.msra.mxu0 %v370
  %468 = vmatprep.subr.mxu0 0.0
  %469 = vmatpush1.msra.mxu0 %v369
  %470 = vmatprep.subr.mxu0 0.0
  %471 = vmatpush1.msra.mxu0 %v368
  %472 = vmatprep.subr.mxu0 0.0
  %473 = vmatpush1.msra.mxu0 %v367
  %474 = vmatprep.subr.mxu0 0.0
  %475 = vmatpush1.msra.mxu0 %v366
  %476 = vmatprep.subr.mxu0 0.0
  %477 = vmatpush1.msra.mxu0 %v365
  %478 = vmatprep.subr.mxu0 0.0
  %479 = vmatpush1.msra.mxu0 %v364
  %480 = vmatprep.subr.mxu0 0.0
  %481 = vmatpush1.msra.mxu0 %v363
  %482 = vmatprep.subr.mxu0 0.0
  %483 = vmatpush1.msra.mxu0 %v362
  %484 = vmatprep.subr.mxu0 0.0
  %485 = vmatpush1.msra.mxu0 %v361
  %486 = vmatprep.subr.mxu0 0.0
  %487 = vmatpush1.msra.mxu0 %v360
  %488 = vmatprep.subr.mxu0 0.0
  %489 = vmatpush1.msra.mxu0 %v359
  %490 = vmatprep.subr.mxu0 0.0
  %491 = vmatpush2.msra.mxu0 0.0
  %492 = vmatprep.subr.mxu0 0.0
  %493 = vmatpush2.msra.mxu0 0.0
  %494 = vmatprep.subr.mxu0 0.0
  %495 = vmatpush2.msra.mxu0 0.0
  %496 = vmatprep.subr.mxu0 0.0
  %497 = vmatpush2.msra.mxu0 0.0
  %498 = vmatprep.subr.mxu0 0.0
  %499 = vmatpush2.msra.mxu0 0.0
  %500 = vmatprep.subr.mxu0 0.0
  %501 = vmatpush2.msra.mxu0 0.0
  %502 = vmatprep.subr.mxu0 0.0
  %503 = vmatpush2.msra.mxu0 0.0
  %504 = vmatprep.subr.mxu0 0.0
  %505 = vmatpush2.msra.mxu0 0.0
  %506 = vmatprep.subr.mxu0 0.0
  %507 = vmatpush2.msra.mxu0 0.0
  %508 = vmatprep.subr.mxu0 0.0
  %509 = vmatpush2.msra.mxu0 0.0
  %510 = vmatprep.subr.mxu0 0.0
  %511 = vmatpush2.msra.mxu0 0.0
  %512 = vmatprep.subr.mxu0 0.0
  %513 = vmatpush2.msra.mxu0 0.0
  %514 = vmatprep.subr.mxu0 0.0
  %515 = vmatpush2.msra.mxu0 0.0
  %516 = vmatprep.subr.mxu0 0.0
  %517 = vmatpush2.msra.mxu0 0.0
  %518 = vmatprep.subr.mxu0 0.0
  %519 = vmatpush2.msra.mxu0 0.0
  %520 = vmatprep.subr.mxu0 0.0
  %521 = vmatpush2.msra.mxu0 0.0
  %522 = vmatprep.mubr.f32.mxu0 0.0
  %523 = vmatmul.mubr.f32.gmra.mxu0 %v453
  %v524 = vpop.f32.mrf.mxu0
  %v525 = vadd.f32 %v457, %v524
  %v526 = vpop.f32.mrf.mxu0
  %527 = vdwg.mxu0
  %528 = vst [vmem:[%s4] sm:$0xff] 0.0
  %529 = vst [vmem:[%s4 + $0x8] sm:$0xff] 0.0
  %530 = vst [vmem:[%s4 + $0x10] sm:$0xff] 0.0
  %vm531 = vcmask 58368
  %532 = vst.msk [vmem:[%s4] sm:$0x3] %vm531, %v353
  %533 = vst [vmem:[%s4 + $0x8] sm:$0x3] %v450
  %534 = vst [vmem:[%s4 + $0x10] sm:$0x3] %v525
  // Predicated region
  $region14: #{feature_extractor_forward.1} parent=0 // pred_check
    _
  $region15: #{feature_extractor_forward.1} parent=0 // pred_check_branch
    %536 = sbr.rel (0) target = $region17
  $region16: #{feature_extractor_forward.1} parent=0 // pred_region
    _
  $region17: #{feature_extractor_forward.1} parent=0 // pred_fallthru
    _
  // Predicated region
  $region18: #{feature_extractor_forward.1} parent=0 // pred_check
    _
  $region19: #{feature_extractor_forward.1} parent=0 // pred_check_branch
    %538 = sbr.rel (0) target = $region21
  $region20: #{feature_extractor_forward.1} parent=0 // pred_region
    _
  $region21: #{feature_extractor_forward.1} parent=0 // pred_fallthru
    _
  // Predicated region
  $region22: #{feature_extractor_forward.1} parent=0 // pred_check
    _
  $region23: #{feature_extractor_forward.1} parent=0 // pred_check_branch
    %540 = sbr.rel (0) target = $region25
  $region24: #{feature_extractor_forward.1} parent=0 // pred_region
    _
  $region25: #{feature_extractor_forward.1} parent=0 // pred_fallthru
    _
  // Predicated region
  $region26: #{feature_extractor_forward.1} parent=0 // pred_check
    _
  $region27: #{feature_extractor_forward.1} parent=0 // pred_check_branch
    %542 = sbr.rel (0) target = $region29
  $region28: #{feature_extractor_forward.1} parent=0 // pred_region
    _
  $region29: #{feature_extractor_forward.1} parent=0 // pred_fallthru
    _

</llo_original>
